<compile_context>
chip_gen: v7x
topology: tpu7x:2x2x1
jax: 0.10.0
libtpu: 0.0.40
codegen_flags: <defaults>
</compile_context>

<pallas_src>
from functools import partial

import jax
import jax.numpy as jnp
from jax import lax
from jax.experimental import pallas as pl
from jax.experimental.pallas import tpu as pltpu


def cnn_kernel(x_ref, w_ref, b_ref, o_ref, *, l_out, group):
    """One N-tile: single MXU matmul + max over L_out groups + bias + ReLU."""
    # (tn, C_in*L) @ (C_in*L, L_out*group) -> (tn, L_out*group): one MXU push.
    y = jnp.dot(x_ref[...], w_ref[...], preferred_element_type=jnp.float32)
    # Max over output positions; every slice is 128-lane aligned
    # (group % 128 == 0), so this is plain VPU maximum work, no XLU shuffles.
    acc = y[:, 0:group]
    for t in range(1, l_out):                       # static, small, unrolled
        acc = jnp.maximum(acc, y[:, t * group:(t + 1) * group])
    # Bias + ReLU hoisted out of the reduction (exact for t-invariant bias).
    # Full (tn, group) store -> unmasked, lane-dense vst; padded lanes are 0.
    o_ref[...] = jnp.maximum(acc + b_ref[...], 0.0)


def _build_toeplitz_weight(w, l, padding, group):
    """PyTorch Conv1d weight (C_out, C_in, K) -> Toeplitz (C_in*L, L_out*group).

    Column t*group + co, dotted with the flat input row x[n].reshape(C_in*L),
    yields the conv output at position t, channel co (bias excluded).  The
    conv's zero padding is absorbed by the zero structure, so the input needs
    no explicit padding.  Lanes [C_out:group) of each group stay zero and are
    sliced off in the wrapper.
    """
    c_out, c_in, k = w.shape
    l_out = l + 2 * padding - k + 1
    w_tc = jnp.transpose(w, (1, 2, 0)).astype(jnp.float32)   # (C_in, K, C_out)
    w_big = jnp.zeros((c_in, l, l_out, group), dtype=jnp.float32)
    for t in range(l_out):                                   # static, small
        lo = t - padding                 # input index hit by kernel tap 0
        k_start = max(0, -lo)            # first tap inside the input
        k_end = min(k, l - lo)           # one past last tap inside the input
        w_big = w_big.at[:, lo + k_start:lo + k_end, t, :c_out].set(
            w_tc[:, k_start:k_end, :])
    return w_big.reshape(c_in * l, l_out * group), l_out


def _choose_tile_n(n, width_elems):
    """N tile: multiple of 8 sublanes; capped so the f32 pre-reduction matmul
    result (tn, L_out*group) stays within a ~2 MiB VMEM budget while still
    giving multiple grid steps (pipelining + megacore) once N is large."""
    budget_bytes = 2 * 1024 * 1024
    cap = (budget_bytes // (4 * width_elems)) // 8 * 8
    cap = max(8, min(256, cap))
    if n <= cap:
        return ((n + 7) // 8) * 8
    return cap


@partial(jax.jit, static_argnames=("kernel_size", "padding"))
def cnn_forward(x, w, b, *, kernel_size, padding):
    """x: (S, B, C_in, L) f32 -> (S, B, C_out); matches PyTorch CNN.forward."""
    s, bsz, c_in, l = x.shape
    c_out = w.shape[0]
    assert w.shape[-1] == kernel_size

    group = ((c_out + 127) // 128) * 128        # pad each position-group to 128 lanes
    w_big, l_out = _build_toeplitz_weight(w, l, padding, group)
    b_pad = jnp.zeros((1, group), dtype=jnp.float32).at[0, :c_out].set(
        b.astype(jnp.float32))

    n = s * bsz
    x2d = x.reshape(n, c_in * l).astype(jnp.float32)   # free reshape, no copy

    tn = _choose_tile_n(n, l_out * group)
    n_pad = pl.cdiv(n, tn) * tn
    if n_pad != n:                               # remainder handling: zero-pad rows
        x2d = jnp.pad(x2d, ((0, n_pad - n), (0, 0)))

    out = pl.pallas_call(
        partial(cnn_kernel, l_out=l_out, group=group),
        out_shape=jax.ShapeDtypeStruct((n_pad, group), jnp.float32),
        grid=(n_pad // tn,),
        in_specs=[
            pl.BlockSpec((tn, c_in * l), lambda i: (i, 0)),
            pl.BlockSpec((c_in * l, l_out * group), lambda i: (0, 0)),  # resident
            pl.BlockSpec((1, group), lambda i: (0, 0)),                 # resident
        ],
        out_specs=pl.BlockSpec((tn, group), lambda i: (i, 0)),  # lane-dense store
        compiler_params=pltpu.CompilerParams(
            dimension_semantics=("parallel",)),  # independent N tiles -> megacore ok
    )(x2d, w_big, b_pad)
    return out[:n, :c_out].reshape(s, bsz, c_out)


def cnn_reference(x, w, b, *, kernel_size, padding):
    """Pure-JAX reference (lax conv, highest precision) mirroring PyTorch."""
    s, bsz, c_in, l = x.shape
    x_flat = x.reshape(s * bsz, c_in, l)
    y = lax.conv_general_dilated(
        x_flat, w, window_strides=(1,), padding=[(padding, padding)],
        dimension_numbers=("NCW", "OIW", "NCW"),
        precision=lax.Precision.HIGHEST)
    y = y + b.reshape(1, -1, 1)
    y = jnp.maximum(y, 0.0)
    y = jnp.max(y, axis=-1)
    return y.reshape(s, bsz, -1)


if __name__ == "__main__":
    # Small shapes consistent with the module's forward signature:
    # input (max_sentence_len, batch, char_embed_size, max_word_len)
    S, B = 4, 2
    CHAR_EMBED = 16     # in_channels
    WORD_EMBED = 32     # out_channels
    MAX_WORD_LEN = 12
    KERNEL_SIZE = 5
    PADDING = 1

    key = jax.random.PRNGKey(0)
    kx, kw, kb = jax.random.split(key, 3)
    x = jax.random.normal(kx, (S, B, CHAR_EMBED, MAX_WORD_LEN), dtype=jnp.float32)
    # Deterministic parameter init (shapes match nn.Conv1d(C_in, C_out, K)).
    fan_in = CHAR_EMBED * KERNEL_SIZE
    bound = 1.0 / (fan_in ** 0.5)
    w = jax.random.uniform(kw, (WORD_EMBED, CHAR_EMBED, KERNEL_SIZE),
                           minval=-bound, maxval=bound, dtype=jnp.float32)
    b = jax.random.uniform(kb, (WORD_EMBED,),
                           minval=-bound, maxval=bound, dtype=jnp.float32)

    out = cnn_forward(x, w, b, kernel_size=KERNEL_SIZE, padding=PADDING)
    out = jax.block_until_ready(out)

    ref = cnn_reference(x, w, b, kernel_size=KERNEL_SIZE, padding=PADDING)
    assert out.shape == (S, B, WORD_EMBED), out.shape
    # Tolerance absorbs MXU f32 multi-pass differences vs the XLA conv; any
    # structural bug would produce O(0.1-1) errors.
    assert jnp.allclose(out, ref, atol=2e-3, rtol=2e-3), "mismatch vs reference"

    print("KERNEL_OK")
</pallas_src>

<mosaic_0001>
module attributes {stable_mosaic.version = 11 : i64} {
  func.func @cnn_kernel(%arg0: i32, %arg1: memref<8x192xf32, #tpu.memory_space<vmem>>, %arg2: memref<192x1280xf32, #tpu.memory_space<vmem>>, %arg3: memref<1x128xf32, #tpu.memory_space<vmem>>, %arg4: memref<8x128xf32, #tpu.memory_space<vmem>>) attributes {dimension_semantics = [#tpu.dimension_semantics<parallel>], iteration_bounds = array<i64: 1>, scalar_prefetch = 0 : i64, scratch_operands = 0 : i64, tpu.core_type = #tpu.core_type<tc>, window_params = [{transform_indices = @transform_0, window_bounds = array<i64: 8, 192>}, {pipeline_mode = #tpu.pipeline_mode<synchronous>, transform_indices = @transform_1, window_bounds = array<i64: 192, 1280>}, {pipeline_mode = #tpu.pipeline_mode<synchronous>, transform_indices = @transform_2, window_bounds = array<i64: 1, 128>}, {transform_indices = @transform_3, window_bounds = array<i64: 8, 128>}]} {
    %c0 = arith.constant 0 : index
    %c0_0 = arith.constant 0 : index
    %0 = vector.load %arg1[%c0, %c0_0] : memref<8x192xf32, #tpu.memory_space<vmem>>, vector<8x192xf32>
    %c0_1 = arith.constant 0 : index
    %c0_2 = arith.constant 0 : index
    %1 = vector.load %arg2[%c0_1, %c0_2] : memref<192x1280xf32, #tpu.memory_space<vmem>>, vector<192x1280xf32>
    %cst = arith.constant dense<0.000000e+00> : vector<8x1280xf32>
    %2 = tpu.matmul %0, %1, %cst {dimension_numbers = #tpu.dot_dimension_numbers<[1], [0], [0], [1], [0, 0, 1, 1], [], []>} : vector<8x192xf32>, vector<192x1280xf32>, vector<8x1280xf32> -> vector<8x1280xf32>
    %3 = vector.extract_strided_slice %2 {offsets = [0, 0], sizes = [8, 128], strides = [1, 1]} : vector<8x1280xf32> to vector<8x128xf32>
    %4 = vector.extract_strided_slice %2 {offsets = [0, 128], sizes = [8, 128], strides = [1, 1]} : vector<8x1280xf32> to vector<8x128xf32>
    %5 = arith.maximumf %3, %4 : vector<8x128xf32>
    %6 = vector.extract_strided_slice %2 {offsets = [0, 256], sizes = [8, 128], strides = [1, 1]} : vector<8x1280xf32> to vector<8x128xf32>
    %7 = arith.maximumf %5, %6 : vector<8x128xf32>
    %8 = vector.extract_strided_slice %2 {offsets = [0, 384], sizes = [8, 128], strides = [1, 1]} : vector<8x1280xf32> to vector<8x128xf32>
    %9 = arith.maximumf %7, %8 : vector<8x128xf32>
    %10 = vector.extract_strided_slice %2 {offsets = [0, 512], sizes = [8, 128], strides = [1, 1]} : vector<8x1280xf32> to vector<8x128xf32>
    %11 = arith.maximumf %9, %10 : vector<8x128xf32>
    %12 = vector.extract_strided_slice %2 {offsets = [0, 640], sizes = [8, 128], strides = [1, 1]} : vector<8x1280xf32> to vector<8x128xf32>
    %13 = arith.maximumf %11, %12 : vector<8x128xf32>
    %14 = vector.extract_strided_slice %2 {offsets = [0, 768], sizes = [8, 128], strides = [1, 1]} : vector<8x1280xf32> to vector<8x128xf32>
    %15 = arith.maximumf %13, %14 : vector<8x128xf32>
    %16 = vector.extract_strided_slice %2 {offsets = [0, 896], sizes = [8, 128], strides = [1, 1]} : vector<8x1280xf32> to vector<8x128xf32>
    %17 = arith.maximumf %15, %16 : vector<8x128xf32>
    %18 = vector.extract_strided_slice %2 {offsets = [0, 1024], sizes = [8, 128], strides = [1, 1]} : vector<8x1280xf32> to vector<8x128xf32>
    %19 = arith.maximumf %17, %18 : vector<8x128xf32>
    %20 = vector.extract_strided_slice %2 {offsets = [0, 1152], sizes = [8, 128], strides = [1, 1]} : vector<8x1280xf32> to vector<8x128xf32>
    %21 = arith.maximumf %19, %20 : vector<8x128xf32>
    %c0_3 = arith.constant 0 : index
    %c0_4 = arith.constant 0 : index
    %22 = vector.load %arg3[%c0_3, %c0_4] : memref<1x128xf32, #tpu.memory_space<vmem>>, vector<1x128xf32>
    %23 = vector.broadcast %22 : vector<1x128xf32> to vector<8x128xf32>
    %24 = arith.addf %21, %23 : vector<8x128xf32>
    %cst_5 = arith.constant 0.000000e+00 : f32
    %25 = vector.broadcast %cst_5 : f32 to vector<8x128xf32>
    %26 = arith.maximumf %24, %25 : vector<8x128xf32>
    %c0_6 = arith.constant 0 : index
    %c0_7 = arith.constant 0 : index
    %27 = vector.load %arg4[%c0_6, %c0_7] : memref<8x128xf32, #tpu.memory_space<vmem>>, vector<8x128xf32>
    tpu.vector_store %arg4[%c0_6, %c0_7], %26 {strides = array<i32>} : memref<8x128xf32, #tpu.memory_space<vmem>>, vector<8x128xf32>,
    return
  }
  func.func @transform_0(%arg0: i32) -> (i32, i32) {
    %c0_i32 = arith.constant 0 : i32
    %c0_i32_0 = arith.constant 0 : i32
    return %arg0, %c0_i32 : i32, i32
  }
  func.func @transform_1(%arg0: i32) -> (i32, i32) {
    %c0_i32 = arith.constant 0 : i32
    %c0_i32_0 = arith.constant 0 : i32
    %c0_i32_1 = arith.constant 0 : i32
    return %c0_i32, %c0_i32_0 : i32, i32
  }
  func.func @transform_2(%arg0: i32) -> (i32, i32) {
    %c0_i32 = arith.constant 0 : i32
    %c0_i32_0 = arith.constant 0 : i32
    %c0_i32_1 = arith.constant 0 : i32
    return %c0_i32, %c0_i32_0 : i32, i32
  }
  func.func @transform_3(%arg0: i32) -> (i32, i32) {
    %c0_i32 = arith.constant 0 : i32
    %c0_i32_0 = arith.constant 0 : i32
    return %arg0, %c0_i32 : i32, i32
  }
}

</mosaic_0001>

<llo_original>
// kernel: cnn_forward.1
$region0: #{cnn_forward.1}
  #allocation0 [shape = 'u32[]', space=smem, size = 0x4, offset = 0x4, fixed_abs, tag = 'smem constant byte address 0x4 - core index']
  #allocation1 [shape = 'u32[144,128]{1,0:T(1,128)}', space=vmem, size = 0x12000, scoped, tag = 'internal scratch']
  %s0 = inlined_call_operand.vmem [shape: f32[8,192], index: 0, kind: input, shape index: {}]
  %s1 = inlined_call_operand.vmem [shape: f32[192,1280], index: 1, kind: input, shape index: {}]
  %s2 = inlined_call_operand.vmem [shape: f32[1,128], index: 2, kind: input, shape index: {}]
  %s3 = inlined_call_operand.hbm [shape: f32[8,128], index: 3, kind: output, shape index: {}]
  %s4 = sld [smem:[#allocation0]]
  $region22: #{cnn_forward.1} parent=0
    _
  %s6 = ssub.s32 1, %s4
  %s7 = scalar_select 0, %s6, %s4
  $region1: #{cnn_forward.1} parent=0
    #allocation2 [shape = 'u8[4096]{0}', space=vmem, size = 0x1000, scoped, tag = 'output window, operand 0, single buffered']
    #allocation3 [shape = 's32[1]{0}', space=sflag, size = 0x4, scoped, tag = 'scoped memory for cnn_forward.1']
    %8 = vsyncpa [#allocation3], 0
    // Predicated region
    $region2: #{cnn_forward.1} parent=1 // pred_check
      _
    $region3: #{cnn_forward.1} parent=1 // pred_check_branch
      %10 = sbr.rel (0) target = $region5
    $region4: #{cnn_forward.1} parent=1 // pred_region
      _
    $region5: #{cnn_forward.1} parent=1 // pred_fallthru
      _
    // Predicated region
    $region6: #{cnn_forward.1} parent=1 // pred_check
      _
    $region7: #{cnn_forward.1} parent=1 // pred_check_branch
      %12 = sbr.rel (0) target = $region9
    $region8: #{cnn_forward.1} parent=1 // pred_region
      _
    $region9: #{cnn_forward.1} parent=1 // pred_fallthru
      _
    // Predicated region
    $region10: #{cnn_forward.1} parent=1 // pred_check
      _
    $region11: #{cnn_forward.1} parent=1 // pred_check_branch
      %14 = sbr.rel (0) target = $region13
    $region12: #{cnn_forward.1} parent=1 // pred_region
      _
    $region13: #{cnn_forward.1} parent=1 // pred_fallthru
      _
    %v15 = vld [vmem:[%s0] sm:$0xff]
    %v16 = vld [vmem:[%s0 + $0x8] sm:$0xff]
    %v17 = vld [vmem:[%s1] sm:$0xff]
    %v18 = vld [vmem:[%s1 + $0x8] sm:$0xff]
    %v19 = vld [vmem:[%s1 + $0x10] sm:$0xff]
    %v20 = vld [vmem:[%s1 + $0x18] sm:$0xff]
    %v21 = vld [vmem:[%s1 + $0x20] sm:$0xff]
    %v22 = vld [vmem:[%s1 + $0x28] sm:$0xff]
    %v23 = vld [vmem:[%s1 + $0x30] sm:$0xff]
    %v24 = vld [vmem:[%s1 + $0x38] sm:$0xff]
    %v25 = vld [vmem:[%s1 + $0x40] sm:$0xff]
    %v26 = vld [vmem:[%s1 + $0x48] sm:$0xff]
    %v27 = vld [vmem:[%s1 + $0x50] sm:$0xff]
    %v28 = vld [vmem:[%s1 + $0x58] sm:$0xff]
    %v29 = vld [vmem:[%s1 + $0x60] sm:$0xff]
    %v30 = vld [vmem:[%s1 + $0x68] sm:$0xff]
    %v31 = vld [vmem:[%s1 + $0x70] sm:$0xff]
    %v32 = vld [vmem:[%s1 + $0x78] sm:$0xff]
    %v33 = vld [vmem:[%s1 + $0x80] sm:$0xff]
    %v34 = vld [vmem:[%s1 + $0x88] sm:$0xff]
    %v35 = vld [vmem:[%s1 + $0x90] sm:$0xff]
    %v36 = vld [vmem:[%s1 + $0x98] sm:$0xff]
    %v37 = vld [vmem:[%s1 + $0xa0] sm:$0xff]
    %v38 = vld [vmem:[%s1 + $0xa8] sm:$0xff]
    %v39 = vld [vmem:[%s1 + $0xb0] sm:$0xff]
    %v40 = vld [vmem:[%s1 + $0xb8] sm:$0xff]
    %v41 = vld [vmem:[%s1 + $0xc0] sm:$0xff]
    %v42 = vld [vmem:[%s1 + $0xc8] sm:$0xff]
    %v43 = vld [vmem:[%s1 + $0xd0] sm:$0xff]
    %v44 = vld [vmem:[%s1 + $0xd8] sm:$0xff]
    %v45 = vld [vmem:[%s1 + $0xe0] sm:$0xff]
    %v46 = vld [vmem:[%s1 + $0xe8] sm:$0xff]
    %v47 = vld [vmem:[%s1 + $0xf0] sm:$0xff]
    %v48 = vld [vmem:[%s1 + $0xf8] sm:$0xff]
    %v49 = vld [vmem:[%s1 + $0x100] sm:$0xff]
    %v50 = vld [vmem:[%s1 + $0x108] sm:$0xff]
    %v51 = vld [vmem:[%s1 + $0x110] sm:$0xff]
    %v52 = vld [vmem:[%s1 + $0x118] sm:$0xff]
    %v53 = vld [vmem:[%s1 + $0x120] sm:$0xff]
    %v54 = vld [vmem:[%s1 + $0x128] sm:$0xff]
    %v55 = vld [vmem:[%s1 + $0x130] sm:$0xff]
    %v56 = vld [vmem:[%s1 + $0x138] sm:$0xff]
    %v57 = vld [vmem:[%s1 + $0x140] sm:$0xff]
    %v58 = vld [vmem:[%s1 + $0x148] sm:$0xff]
    %v59 = vld [vmem:[%s1 + $0x150] sm:$0xff]
    %v60 = vld [vmem:[%s1 + $0x158] sm:$0xff]
    %v61 = vld [vmem:[%s1 + $0x160] sm:$0xff]
    %v62 = vld [vmem:[%s1 + $0x168] sm:$0xff]
    %v63 = vld [vmem:[%s1 + $0x170] sm:$0xff]
    %v64 = vld [vmem:[%s1 + $0x178] sm:$0xff]
    %v65 = vld [vmem:[%s1 + $0x180] sm:$0xff]
    %v66 = vld [vmem:[%s1 + $0x188] sm:$0xff]
    %v67 = vld [vmem:[%s1 + $0x190] sm:$0xff]
    %v68 = vld [vmem:[%s1 + $0x198] sm:$0xff]
    %v69 = vld [vmem:[%s1 + $0x1a0] sm:$0xff]
    %v70 = vld [vmem:[%s1 + $0x1a8] sm:$0xff]
    %v71 = vld [vmem:[%s1 + $0x1b0] sm:$0xff]
    %v72 = vld [vmem:[%s1 + $0x1b8] sm:$0xff]
    %v73 = vld [vmem:[%s1 + $0x1c0] sm:$0xff]
    %v74 = vld [vmem:[%s1 + $0x1c8] sm:$0xff]
    %v75 = vld [vmem:[%s1 + $0x1d0] sm:$0xff]
    %v76 = vld [vmem:[%s1 + $0x1d8] sm:$0xff]
    %v77 = vld [vmem:[%s1 + $0x1e0] sm:$0xff]
    %v78 = vld [vmem:[%s1 + $0x1e8] sm:$0xff]
    %v79 = vld [vmem:[%s1 + $0x1f0] sm:$0xff]
    %v80 = vld [vmem:[%s1 + $0x1f8] sm:$0xff]
    %v81 = vld [vmem:[%s1 + $0x200] sm:$0xff]
    %v82 = vld [vmem:[%s1 + $0x208] sm:$0xff]
    %v83 = vld [vmem:[%s1 + $0x210] sm:$0xff]
    %v84 = vld [vmem:[%s1 + $0x218] sm:$0xff]
    %v85 = vld [vmem:[%s1 + $0x220] sm:$0xff]
    %v86 = vld [vmem:[%s1 + $0x228] sm:$0xff]
    %v87 = vld [vmem:[%s1 + $0x230] sm:$0xff]
    %v88 = vld [vmem:[%s1 + $0x238] sm:$0xff]
    %v89 = vld [vmem:[%s1 + $0x240] sm:$0xff]
    %v90 = vld [vmem:[%s1 + $0x248] sm:$0xff]
    %v91 = vld [vmem:[%s1 + $0x250] sm:$0xff]
    %v92 = vld [vmem:[%s1 + $0x258] sm:$0xff]
    %v93 = vld [vmem:[%s1 + $0x260] sm:$0xff]
    %v94 = vld [vmem:[%s1 + $0x268] sm:$0xff]
    %v95 = vld [vmem:[%s1 + $0x270] sm:$0xff]
    %v96 = vld [vmem:[%s1 + $0x278] sm:$0xff]
    %v97 = vld [vmem:[%s1 + $0x280] sm:$0xff]
    %v98 = vld [vmem:[%s1 + $0x288] sm:$0xff]
    %v99 = vld [vmem:[%s1 + $0x290] sm:$0xff]
    %v100 = vld [vmem:[%s1 + $0x298] sm:$0xff]
    %v101 = vld [vmem:[%s1 + $0x2a0] sm:$0xff]
    %v102 = vld [vmem:[%s1 + $0x2a8] sm:$0xff]
    %v103 = vld [vmem:[%s1 + $0x2b0] sm:$0xff]
    %v104 = vld [vmem:[%s1 + $0x2b8] sm:$0xff]
    %v105 = vld [vmem:[%s1 + $0x2c0] sm:$0xff]
    %v106 = vld [vmem:[%s1 + $0x2c8] sm:$0xff]
    %v107 = vld [vmem:[%s1 + $0x2d0] sm:$0xff]
    %v108 = vld [vmem:[%s1 + $0x2d8] sm:$0xff]
    %v109 = vld [vmem:[%s1 + $0x2e0] sm:$0xff]
    %v110 = vld [vmem:[%s1 + $0x2e8] sm:$0xff]
    %v111 = vld [vmem:[%s1 + $0x2f0] sm:$0xff]
    %v112 = vld [vmem:[%s1 + $0x2f8] sm:$0xff]
    %v113 = vld [vmem:[%s1 + $0x300] sm:$0xff]
    %v114 = vld [vmem:[%s1 + $0x308] sm:$0xff]
    %v115 = vld [vmem:[%s1 + $0x310] sm:$0xff]
    %v116 = vld [vmem:[%s1 + $0x318] sm:$0xff]
    %v117 = vld [vmem:[%s1 + $0x320] sm:$0xff]
    %v118 = vld [vmem:[%s1 + $0x328] sm:$0xff]
    %v119 = vld [vmem:[%s1 + $0x330] sm:$0xff]
    %v120 = vld [vmem:[%s1 + $0x338] sm:$0xff]
    %v121 = vld [vmem:[%s1 + $0x340] sm:$0xff]
    %v122 = vld [vmem:[%s1 + $0x348] sm:$0xff]
    %v123 = vld [vmem:[%s1 + $0x350] sm:$0xff]
    %v124 = vld [vmem:[%s1 + $0x358] sm:$0xff]
    %v125 = vld [vmem:[%s1 + $0x360] sm:$0xff]
    %v126 = vld [vmem:[%s1 + $0x368] sm:$0xff]
    %v127 = vld [vmem:[%s1 + $0x370] sm:$0xff]
    %v128 = vld [vmem:[%s1 + $0x378] sm:$0xff]
    %v129 = vld [vmem:[%s1 + $0x380] sm:$0xff]
    %v130 = vld [vmem:[%s1 + $0x388] sm:$0xff]
    %v131 = vld [vmem:[%s1 + $0x390] sm:$0xff]
    %v132 = vld [vmem:[%s1 + $0x398] sm:$0xff]
    %v133 = vld [vmem:[%s1 + $0x3a0] sm:$0xff]
    %v134 = vld [vmem:[%s1 + $0x3a8] sm:$0xff]
    %v135 = vld [vmem:[%s1 + $0x3b0] sm:$0xff]
    %v136 = vld [vmem:[%s1 + $0x3b8] sm:$0xff]
    %v137 = vld [vmem:[%s1 + $0x3c0] sm:$0xff]
    %v138 = vld [vmem:[%s1 + $0x3c8] sm:$0xff]
    %v139 = vld [vmem:[%s1 + $0x3d0] sm:$0xff]
    %v140 = vld [vmem:[%s1 + $0x3d8] sm:$0xff]
    %v141 = vld [vmem:[%s1 + $0x3e0] sm:$0xff]
    %v142 = vld [vmem:[%s1 + $0x3e8] sm:$0xff]
    %v143 = vld [vmem:[%s1 + $0x3f0] sm:$0xff]
    %v144 = vld [vmem:[%s1 + $0x3f8] sm:$0xff]
    %v145 = vld [vmem:[%s1 + $0x400] sm:$0xff]
    %v146 = vld [vmem:[%s1 + $0x408] sm:$0xff]
    %v147 = vld [vmem:[%s1 + $0x410] sm:$0xff]
    %v148 = vld [vmem:[%s1 + $0x418] sm:$0xff]
    %v149 = vld [vmem:[%s1 + $0x420] sm:$0xff]
    %v150 = vld [vmem:[%s1 + $0x428] sm:$0xff]
    %v151 = vld [vmem:[%s1 + $0x430] sm:$0xff]
    %v152 = vld [vmem:[%s1 + $0x438] sm:$0xff]
    %v153 = vld [vmem:[%s1 + $0x440] sm:$0xff]
    %v154 = vld [vmem:[%s1 + $0x448] sm:$0xff]
    %v155 = vld [vmem:[%s1 + $0x450] sm:$0xff]
    %v156 = vld [vmem:[%s1 + $0x458] sm:$0xff]
    %v157 = vld [vmem:[%s1 + $0x460] sm:$0xff]
    %v158 = vld [vmem:[%s1 + $0x468] sm:$0xff]
    %v159 = vld [vmem:[%s1 + $0x470] sm:$0xff]
    %v160 = vld [vmem:[%s1 + $0x478] sm:$0xff]
    %v161 = vld [vmem:[%s1 + $0x480] sm:$0xff]
    %v162 = vld [vmem:[%s1 + $0x488] sm:$0xff]
    %v163 = vld [vmem:[%s1 + $0x490] sm:$0xff]
    %v164 = vld [vmem:[%s1 + $0x498] sm:$0xff]
    %v165 = vld [vmem:[%s1 + $0x4a0] sm:$0xff]
    %v166 = vld [vmem:[%s1 + $0x4a8] sm:$0xff]
    %v167 = vld [vmem:[%s1 + $0x4b0] sm:$0xff]
    %v168 = vld [vmem:[%s1 + $0x4b8] sm:$0xff]
    %v169 = vld [vmem:[%s1 + $0x4c0] sm:$0xff]
    %v170 = vld [vmem:[%s1 + $0x4c8] sm:$0xff]
    %v171 = vld [vmem:[%s1 + $0x4d0] sm:$0xff]
    %v172 = vld [vmem:[%s1 + $0x4d8] sm:$0xff]
    %v173 = vld [vmem:[%s1 + $0x4e0] sm:$0xff]
    %v174 = vld [vmem:[%s1 + $0x4e8] sm:$0xff]
    %v175 = vld [vmem:[%s1 + $0x4f0] sm:$0xff]
    %v176 = vld [vmem:[%s1 + $0x4f8] sm:$0xff]
    %v177 = vld [vmem:[%s1 + $0x500] sm:$0xff]
    %v178 = vld [vmem:[%s1 + $0x508] sm:$0xff]
    %v179 = vld [vmem:[%s1 + $0x510] sm:$0xff]
    %v180 = vld [vmem:[%s1 + $0x518] sm:$0xff]
    %v181 = vld [vmem:[%s1 + $0x520] sm:$0xff]
    %v182 = vld [vmem:[%s1 + $0x528] sm:$0xff]
    %v183 = vld [vmem:[%s1 + $0x530] sm:$0xff]
    %v184 = vld [vmem:[%s1 + $0x538] sm:$0xff]
    %v185 = vld [vmem:[%s1 + $0x540] sm:$0xff]
    %v186 = vld [vmem:[%s1 + $0x548] sm:$0xff]
    %v187 = vld [vmem:[%s1 + $0x550] sm:$0xff]
    %v188 = vld [vmem:[%s1 + $0x558] sm:$0xff]
    %v189 = vld [vmem:[%s1 + $0x560] sm:$0xff]
    %v190 = vld [vmem:[%s1 + $0x568] sm:$0xff]
    %v191 = vld [vmem:[%s1 + $0x570] sm:$0xff]
    %v192 = vld [vmem:[%s1 + $0x578] sm:$0xff]
    %v193 = vld [vmem:[%s1 + $0x580] sm:$0xff]
    %v194 = vld [vmem:[%s1 + $0x588] sm:$0xff]
    %v195 = vld [vmem:[%s1 + $0x590] sm:$0xff]
    %v196 = vld [vmem:[%s1 + $0x598] sm:$0xff]
    %v197 = vld [vmem:[%s1 + $0x5a0] sm:$0xff]
    %v198 = vld [vmem:[%s1 + $0x5a8] sm:$0xff]
    %v199 = vld [vmem:[%s1 + $0x5b0] sm:$0xff]
    %v200 = vld [vmem:[%s1 + $0x5b8] sm:$0xff]
    %v201 = vld [vmem:[%s1 + $0x5c0] sm:$0xff]
    %v202 = vld [vmem:[%s1 + $0x5c8] sm:$0xff]
    %v203 = vld [vmem:[%s1 + $0x5d0] sm:$0xff]
    %v204 = vld [vmem:[%s1 + $0x5d8] sm:$0xff]
    %v205 = vld [vmem:[%s1 + $0x5e0] sm:$0xff]
    %v206 = vld [vmem:[%s1 + $0x5e8] sm:$0xff]
    %v207 = vld [vmem:[%s1 + $0x5f0] sm:$0xff]
    %v208 = vld [vmem:[%s1 + $0x5f8] sm:$0xff]
    %v209 = vld [vmem:[%s1 + $0x600] sm:$0xff]
    %v210 = vld [vmem:[%s1 + $0x608] sm:$0xff]
    %v211 = vld [vmem:[%s1 + $0x610] sm:$0xff]
    %v212 = vld [vmem:[%s1 + $0x618] sm:$0xff]
    %v213 = vld [vmem:[%s1 + $0x620] sm:$0xff]
    %v214 = vld [vmem:[%s1 + $0x628] sm:$0xff]
    %v215 = vld [vmem:[%s1 + $0x630] sm:$0xff]
    %v216 = vld [vmem:[%s1 + $0x638] sm:$0xff]
    %v217 = vld [vmem:[%s1 + $0x640] sm:$0xff]
    %v218 = vld [vmem:[%s1 + $0x648] sm:$0xff]
    %v219 = vld [vmem:[%s1 + $0x650] sm:$0xff]
    %v220 = vld [vmem:[%s1 + $0x658] sm:$0xff]
    %v221 = vld [vmem:[%s1 + $0x660] sm:$0xff]
    %v222 = vld [vmem:[%s1 + $0x668] sm:$0xff]
    %v223 = vld [vmem:[%s1 + $0x670] sm:$0xff]
    %v224 = vld [vmem:[%s1 + $0x678] sm:$0xff]
    %v225 = vld [vmem:[%s1 + $0x680] sm:$0xff]
    %v226 = vld [vmem:[%s1 + $0x688] sm:$0xff]
    %v227 = vld [vmem:[%s1 + $0x690] sm:$0xff]
    %v228 = vld [vmem:[%s1 + $0x698] sm:$0xff]
    %v229 = vld [vmem:[%s1 + $0x6a0] sm:$0xff]
    %v230 = vld [vmem:[%s1 + $0x6a8] sm:$0xff]
    %v231 = vld [vmem:[%s1 + $0x6b0] sm:$0xff]
    %v232 = vld [vmem:[%s1 + $0x6b8] sm:$0xff]
    %v233 = vld [vmem:[%s1 + $0x6c0] sm:$0xff]
    %v234 = vld [vmem:[%s1 + $0x6c8] sm:$0xff]
    %v235 = vld [vmem:[%s1 + $0x6d0] sm:$0xff]
    %v236 = vld [vmem:[%s1 + $0x6d8] sm:$0xff]
    %v237 = vld [vmem:[%s1 + $0x6e0] sm:$0xff]
    %v238 = vld [vmem:[%s1 + $0x6e8] sm:$0xff]
    %v239 = vld [vmem:[%s1 + $0x6f0] sm:$0xff]
    %v240 = vld [vmem:[%s1 + $0x6f8] sm:$0xff]
    %v241 = vld [vmem:[%s1 + $0x700] sm:$0xff]
    %v242 = vld [vmem:[%s1 + $0x708] sm:$0xff]
    %v243 = vld [vmem:[%s1 + $0x710] sm:$0xff]
    %v244 = vld [vmem:[%s1 + $0x718] sm:$0xff]
    %v245 = vld [vmem:[%s1 + $0x720] sm:$0xff]
    %v246 = vld [vmem:[%s1 + $0x728] sm:$0xff]
    %v247 = vld [vmem:[%s1 + $0x730] sm:$0xff]
    %v248 = vld [vmem:[%s1 + $0x738] sm:$0xff]
    %v249 = vld [vmem:[%s1 + $0x740] sm:$0xff]
    %v250 = vld [vmem:[%s1 + $0x748] sm:$0xff]
    %v251 = vld [vmem:[%s1 + $0x750] sm:$0xff]
    %v252 = vld [vmem:[%s1 + $0x758] sm:$0xff]
    %v253 = vld [vmem:[%s1 + $0x760] sm:$0xff]
    %v254 = vld [vmem:[%s1 + $0x768] sm:$0xff]
    %v255 = vld [vmem:[%s1 + $0x770] sm:$0xff]
    %v256 = vld [vmem:[%s1 + $0x778] sm:$0xff]
    %vm257 = vcmask 523264
    %v259 = vsel %vm257, %v16, 0
    %261 = vmatprep.subr.mxu0 %v18
    %262 = vmatpush1.msra.mxu0 %v17
    %263 = vmatprep.subr.mxu0 %v28
    %264 = vmatpush1.msra.mxu0 %v27
    %265 = vmatprep.subr.mxu0 %v38
    %266 = vmatpush1.msra.mxu0 %v37
    %267 = vmatprep.subr.mxu0 %v48
    %268 = vmatpush1.msra.mxu0 %v47
    %269 = vmatprep.subr.mxu0 %v58
    %270 = vmatpush1.msra.mxu0 %v57
    %271 = vmatprep.subr.mxu0 %v68
    %272 = vmatpush1.msra.mxu0 %v67
    %273 = vmatprep.subr.mxu0 %v78
    %274 = vmatpush1.msra.mxu0 %v77
    %275 = vmatprep.subr.mxu0 %v88
    %276 = vmatpush1.msra.mxu0 %v87
    %277 = vmatprep.subr.mxu0 %v98
    %278 = vmatpush1.msra.mxu0 %v97
    %279 = vmatprep.subr.mxu0 %v108
    %280 = vmatpush1.msra.mxu0 %v107
    %281 = vmatprep.subr.mxu0 %v118
    %282 = vmatpush1.msra.mxu0 %v117
    %283 = vmatprep.subr.mxu0 %v128
    %284 = vmatpush1.msra.mxu0 %v127
    %285 = vmatprep.subr.mxu0 %v138
    %286 = vmatpush1.msra.mxu0 %v137
    %287 = vmatprep.subr.mxu0 %v148
    %288 = vmatpush1.msra.mxu0 %v147
    %289 = vmatprep.subr.mxu0 %v158
    %290 = vmatpush1.msra.mxu0 %v157
    %291 = vmatprep.subr.mxu0 %v168
    %292 = vmatpush1.msra.mxu0 %v167
    %293 = vmatprep.subr.mxu0 %v178
    %294 = vmatpush1.msra.mxu0 %v177
    %295 = vmatprep.subr.mxu0 %v188
    %296 = vmatpush1.msra.mxu0 %v187
    %297 = vmatprep.subr.mxu0 %v198
    %298 = vmatpush1.msra.mxu0 %v197
    %299 = vmatprep.subr.mxu0 %v208
    %300 = vmatpush1.msra.mxu0 %v207
    %301 = vmatprep.subr.mxu0 %v218
    %302 = vmatpush1.msra.mxu0 %v217
    %303 = vmatprep.subr.mxu0 %v228
    %304 = vmatpush1.msra.mxu0 %v227
    %305 = vmatprep.subr.mxu0 %v238
    %306 = vmatpush1.msra.mxu0 %v237
    %307 = vmatprep.subr.mxu0 %v248
    %308 = vmatpush1.msra.mxu0 %v247
    %309 = vmatprep.subr.mxu0 0.0
    %310 = vmatpush1.msra.mxu0 0.0
    %311 = vmatprep.subr.mxu0 0.0
    %312 = vmatpush1.msra.mxu0 0.0
    %313 = vmatprep.subr.mxu0 0.0
    %314 = vmatpush1.msra.mxu0 0.0
    %315 = vmatprep.subr.mxu0 0.0
    %316 = vmatpush1.msra.mxu0 0.0
    %317 = vmatprep.subr.mxu0 0.0
    %318 = vmatpush1.msra.mxu0 0.0
    %319 = vmatprep.subr.mxu0 0.0
    %320 = vmatpush1.msra.mxu0 0.0
    %321 = vmatprep.subr.mxu0 0.0
    %322 = vmatpush1.msra.mxu0 0.0
    %323 = vmatprep.subr.mxu0 0.0
    %324 = vmatpush1.msra.mxu0 0.0
    %325 = vmatprep.mubr.f32.mxu0 %v259
    %326 = vmatmul.mubr.f32.gmra.mrb[0].mxu0 %v15
    %v327 = vpop.f32.mrb[0].mxu0
    %v328 = vadd.f32 0.0, %v327
    %v329 = vpop.f32.mrb[0].mxu0
    %v330 = vadd.f32 0.0, %v329
    %331 = vdwg.mxu0
    %332 = vmatprep.subr.mxu0 %v20
    %333 = vmatpush1.msra.mxu0 %v19
    %334 = vmatprep.subr.mxu0 %v30
    %335 = vmatpush1.msra.mxu0 %v29
    %336 = vmatprep.subr.mxu0 %v40
    %337 = vmatpush1.msra.mxu0 %v39
    %338 = vmatprep.subr.mxu0 %v50
    %339 = vmatpush1.msra.mxu0 %v49
    %340 = vmatprep.subr.mxu0 %v60
    %341 = vmatpush1.msra.mxu0 %v59
    %342 = vmatprep.subr.mxu0 %v70
    %343 = vmatpush1.msra.mxu0 %v69
    %344 = vmatprep.subr.mxu0 %v80
    %345 = vmatpush1.msra.mxu0 %v79
    %346 = vmatprep.subr.mxu0 %v90
    %347 = vmatpush1.msra.mxu0 %v89
    %348 = vmatprep.subr.mxu0 %v100
    %349 = vmatpush1.msra.mxu0 %v99
    %350 = vmatprep.subr.mxu0 %v110
    %351 = vmatpush1.msra.mxu0 %v109
    %352 = vmatprep.subr.mxu0 %v120
    %353 = vmatpush1.msra.mxu0 %v119
    %354 = vmatprep.subr.mxu0 %v130
    %355 = vmatpush1.msra.mxu0 %v129
    %356 = vmatprep.subr.mxu0 %v140
    %357 = vmatpush1.msra.mxu0 %v139
    %358 = vmatprep.subr.mxu0 %v150
    %359 = vmatpush1.msra.mxu0 %v149
    %360 = vmatprep.subr.mxu0 %v160
    %361 = vmatpush1.msra.mxu0 %v159
    %362 = vmatprep.subr.mxu0 %v170
    %363 = vmatpush1.msra.mxu0 %v169
    %364 = vmatprep.subr.mxu0 %v180
    %365 = vmatpush1.msra.mxu0 %v179
    %366 = vmatprep.subr.mxu0 %v190
    %367 = vmatpush1.msra.mxu0 %v189
    %368 = vmatprep.subr.mxu0 %v200
    %369 = vmatpush1.msra.mxu0 %v199
    %370 = vmatprep.subr.mxu0 %v210
    %371 = vmatpush1.msra.mxu0 %v209
    %372 = vmatprep.subr.mxu0 %v220
    %373 = vmatpush1.msra.mxu0 %v219
    %374 = vmatprep.subr.mxu0 %v230
    %375 = vmatpush1.msra.mxu0 %v229
    %376 = vmatprep.subr.mxu0 %v240
    %377 = vmatpush1.msra.mxu0 %v239
    %378 = vmatprep.subr.mxu0 %v250
    %379 = vmatpush1.msra.mxu0 %v249
    %380 = vmatprep.subr.mxu0 0.0
    %381 = vmatpush1.msra.mxu0 0.0
    %382 = vmatprep.subr.mxu0 0.0
    %383 = vmatpush1.msra.mxu0 0.0
    %384 = vmatprep.subr.mxu0 0.0
    %385 = vmatpush1.msra.mxu0 0.0
    %386 = vmatprep.subr.mxu0 0.0
    %387 = vmatpush1.msra.mxu0 0.0
    %388 = vmatprep.subr.mxu0 0.0
    %389 = vmatpush1.msra.mxu0 0.0
    %390 = vmatprep.subr.mxu0 0.0
    %391 = vmatpush1.msra.mxu0 0.0
    %392 = vmatprep.subr.mxu0 0.0
    %393 = vmatpush1.msra.mxu0 0.0
    %394 = vmatprep.subr.mxu0 0.0
    %395 = vmatpush1.msra.mxu0 0.0
    %396 = vmatprep.mubr.f32.mxu0 %v259
    %397 = vmatmul.mubr.f32.gmra.mrb[0].mxu0 %v15
    %v398 = vpop.f32.mrb[0].mxu0
    %v399 = vadd.f32 0.0, %v398
    %v400 = vpop.f32.mrb[0].mxu0
    %v401 = vadd.f32 0.0, %v400
    %402 = vdwg.mxu0
    %403 = vmatprep.subr.mxu0 %v22
    %404 = vmatpush1.msra.mxu0 %v21
    %405 = vmatprep.subr.mxu0 %v32
    %406 = vmatpush1.msra.mxu0 %v31
    %407 = vmatprep.subr.mxu0 %v42
    %408 = vmatpush1.msra.mxu0 %v41
    %409 = vmatprep.subr.mxu0 %v52
    %410 = vmatpush1.msra.mxu0 %v51
    %411 = vmatprep.subr.mxu0 %v62
    %412 = vmatpush1.msra.mxu0 %v61
    %413 = vmatprep.subr.mxu0 %v72
    %414 = vmatpush1.msra.mxu0 %v71
    %415 = vmatprep.subr.mxu0 %v82
    %416 = vmatpush1.msra.mxu0 %v81
    %417 = vmatprep.subr.mxu0 %v92
    %418 = vmatpush1.msra.mxu0 %v91
    %419 = vmatprep.subr.mxu0 %v102
    %420 = vmatpush1.msra.mxu0 %v101
    %421 = vmatprep.subr.mxu0 %v112
    %422 = vmatpush1.msra.mxu0 %v111
    %423 = vmatprep.subr.mxu0 %v122
    %424 = vmatpush1.msra.mxu0 %v121
    %425 = vmatprep.subr.mxu0 %v132
    %426 = vmatpush1.msra.mxu0 %v131
    %427 = vmatprep.subr.mxu0 %v142
    %428 = vmatpush1.msra.mxu0 %v141
    %429 = vmatprep.subr.mxu0 %v152
    %430 = vmatpush1.msra.mxu0 %v151
    %431 = vmatprep.subr.mxu0 %v162
    %432 = vmatpush1.msra.mxu0 %v161
    %433 = vmatprep.subr.mxu0 %v172
    %434 = vmatpush1.msra.mxu0 %v171
    %435 = vmatprep.subr.mxu0 %v182
    %436 = vmatpush1.msra.mxu0 %v181
    %437 = vmatprep.subr.mxu0 %v192
    %438 = vmatpush1.msra.mxu0 %v191
    %439 = vmatprep.subr.mxu0 %v202
    %440 = vmatpush1.msra.mxu0 %v201
    %441 = vmatprep.subr.mxu0 %v212
    %442 = vmatpush1.msra.mxu0 %v211
    %443 = vmatprep.subr.mxu0 %v222
    %444 = vmatpush1.msra.mxu0 %v221
    %445 = vmatprep.subr.mxu0 %v232
    %446 = vmatpush1.msra.mxu0 %v231
    %447 = vmatprep.subr.mxu0 %v242
    %448 = vmatpush1.msra.mxu0 %v241
    %449 = vmatprep.subr.mxu0 %v252
    %450 = vmatpush1.msra.mxu0 %v251
    %451 = vmatprep.subr.mxu0 0.0
    %452 = vmatpush1.msra.mxu0 0.0
    %453 = vmatprep.subr.mxu0 0.0
    %454 = vmatpush1.msra.mxu0 0.0
    %455 = vmatprep.subr.mxu0 0.0
    %456 = vmatpush1.msra.mxu0 0.0
    %457 = vmatprep.subr.mxu0 0.0
    %458 = vmatpush1.msra.mxu0 0.0
    %459 = vmatprep.subr.mxu0 0.0
    %460 = vmatpush1.msra.mxu0 0.0
    %461 = vmatprep.subr.mxu0 0.0
    %462 = vmatpush1.msra.mxu0 0.0
    %463 = vmatprep.subr.mxu0 0.0
    %464 = vmatpush1.msra.mxu0 0.0
    %465 = vmatprep.subr.mxu0 0.0
    %466 = vmatpush1.msra.mxu0 0.0
    %467 = vmatprep.mubr.f32.mxu0 %v259
    %468 = vmatmul.mubr.f32.gmra.mrb[0].mxu0 %v15
    %v469 = vpop.f32.mrb[0].mxu0
    %v470 = vadd.f32 0.0, %v469
    %v471 = vpop.f32.mrb[0].mxu0
    %v472 = vadd.f32 0.0, %v471
    %473 = vdwg.mxu0
    %474 = vmatprep.subr.mxu0 %v24
    %475 = vmatpush1.msra.mxu0 %v23
    %476 = vmatprep.subr.mxu0 %v34
    %477 = vmatpush1.msra.mxu0 %v33
    %478 = vmatprep.subr.mxu0 %v44
    %479 = vmatpush1.msra.mxu0 %v43
    %480 = vmatprep.subr.mxu0 %v54
    %481 = vmatpush1.msra.mxu0 %v53
    %482 = vmatprep.subr.mxu0 %v64
    %483 = vmatpush1.msra.mxu0 %v63
    %484 = vmatprep.subr.mxu0 %v74
    %485 = vmatpush1.msra.mxu0 %v73
    %486 = vmatprep.subr.mxu0 %v84
    %487 = vmatpush1.msra.mxu0 %v83
    %488 = vmatprep.subr.mxu0 %v94
    %489 = vmatpush1.msra.mxu0 %v93
    %490 = vmatprep.subr.mxu0 %v104
    %491 = vmatpush1.msra.mxu0 %v103
    %492 = vmatprep.subr.mxu0 %v114
    %493 = vmatpush1.msra.mxu0 %v113
    %494 = vmatprep.subr.mxu0 %v124
    %495 = vmatpush1.msra.mxu0 %v123
    %496 = vmatprep.subr.mxu0 %v134
    %497 = vmatpush1.msra.mxu0 %v133
    %498 = vmatprep.subr.mxu0 %v144
    %499 = vmatpush1.msra.mxu0 %v143
    %500 = vmatprep.subr.mxu0 %v154
    %501 = vmatpush1.msra.mxu0 %v153
    %502 = vmatprep.subr.mxu0 %v164
    %503 = vmatpush1.msra.mxu0 %v163
    %504 = vmatprep.subr.mxu0 %v174
    %505 = vmatpush1.msra.mxu0 %v173
    %506 = vmatprep.subr.mxu0 %v184
    %507 = vmatpush1.msra.mxu0 %v183
    %508 = vmatprep.subr.mxu0 %v194
    %509 = vmatpush1.msra.mxu0 %v193
    %510 = vmatprep.subr.mxu0 %v204
    %511 = vmatpush1.msra.mxu0 %v203
    %512 = vmatprep.subr.mxu0 %v214
    %513 = vmatpush1.msra.mxu0 %v213
    %514 = vmatprep.subr.mxu0 %v224
    %515 = vmatpush1.msra.mxu0 %v223
    %516 = vmatprep.subr.mxu0 %v234
    %517 = vmatpush1.msra.mxu0 %v233
    %518 = vmatprep.subr.mxu0 %v244
    %519 = vmatpush1.msra.mxu0 %v243
    %520 = vmatprep.subr.mxu0 %v254
    %521 = vmatpush1.msra.mxu0 %v253
    %522 = vmatprep.subr.mxu0 0.0
    %523 = vmatpush1.msra.mxu0 0.0
    %524 = vmatprep.subr.mxu0 0.0
    %525 = vmatpush1.msra.mxu0 0.0
    %526 = vmatprep.subr.mxu0 0.0
    %527 = vmatpush1.msra.mxu0 0.0
    %528 = vmatprep.subr.mxu0 0.0
    %529 = vmatpush1.msra.mxu0 0.0
    %530 = vmatprep.subr.mxu0 0.0
    %531 = vmatpush1.msra.mxu0 0.0
    %532 = vmatprep.subr.mxu0 0.0
    %533 = vmatpush1.msra.mxu0 0.0
    %534 = vmatprep.subr.mxu0 0.0
    %535 = vmatpush1.msra.mxu0 0.0
    %536 = vmatprep.subr.mxu0 0.0
    %537 = vmatpush1.msra.mxu0 0.0
    %538 = vmatprep.mubr.f32.mxu0 %v259
    %539 = vmatmul.mubr.f32.gmra.mrb[0].mxu0 %v15
    %v540 = vpop.f32.mrb[0].mxu0
    %v541 = vadd.f32 0.0, %v540
    %v542 = vpop.f32.mrb[0].mxu0
    %v543 = vadd.f32 0.0, %v542
    %544 = vdwg.mxu0
    %545 = vmatprep.subr.mxu0 %v26
    %546 = vmatpush1.msra.mxu0 %v25
    %547 = vmatprep.subr.mxu0 %v36
    %548 = vmatpush1.msra.mxu0 %v35
    %549 = vmatprep.subr.mxu0 %v46
    %550 = vmatpush1.msra.mxu0 %v45
    %551 = vmatprep.subr.mxu0 %v56
    %552 = vmatpush1.msra.mxu0 %v55
    %553 = vmatprep.subr.mxu0 %v66
    %554 = vmatpush1.msra.mxu0 %v65
    %555 = vmatprep.subr.mxu0 %v76
    %556 = vmatpush1.msra.mxu0 %v75
    %557 = vmatprep.subr.mxu0 %v86
    %558 = vmatpush1.msra.mxu0 %v85
    %559 = vmatprep.subr.mxu0 %v96
    %560 = vmatpush1.msra.mxu0 %v95
    %561 = vmatprep.subr.mxu0 %v106
    %562 = vmatpush1.msra.mxu0 %v105
    %563 = vmatprep.subr.mxu0 %v116
    %564 = vmatpush1.msra.mxu0 %v115
    %565 = vmatprep.subr.mxu0 %v126
    %566 = vmatpush1.msra.mxu0 %v125
    %567 = vmatprep.subr.mxu0 %v136
    %568 = vmatpush1.msra.mxu0 %v135
    %569 = vmatprep.subr.mxu0 %v146
    %570 = vmatpush1.msra.mxu0 %v145
    %571 = vmatprep.subr.mxu0 %v156
    %572 = vmatpush1.msra.mxu0 %v155
    %573 = vmatprep.subr.mxu0 %v166
    %574 = vmatpush1.msra.mxu0 %v165
    %575 = vmatprep.subr.mxu0 %v176
    %576 = vmatpush1.msra.mxu0 %v175
    %577 = vmatprep.subr.mxu0 %v186
    %578 = vmatpush1.msra.mxu0 %v185
    %579 = vmatprep.subr.mxu0 %v196
    %580 = vmatpush1.msra.mxu0 %v195
    %581 = vmatprep.subr.mxu0 %v206
    %582 = vmatpush1.msra.mxu0 %v205
    %583 = vmatprep.subr.mxu0 %v216
    %584 = vmatpush1.msra.mxu0 %v215
    %585 = vmatprep.subr.mxu0 %v226
    %586 = vmatpush1.msra.mxu0 %v225
    %587 = vmatprep.subr.mxu0 %v236
    %588 = vmatpush1.msra.mxu0 %v235
    %589 = vmatprep.subr.mxu0 %v246
    %590 = vmatpush1.msra.mxu0 %v245
    %591 = vmatprep.subr.mxu0 %v256
    %592 = vmatpush1.msra.mxu0 %v255
    %593 = vmatprep.subr.mxu0 0.0
    %594 = vmatpush1.msra.mxu0 0.0
    %595 = vmatprep.subr.mxu0 0.0
    %596 = vmatpush1.msra.mxu0 0.0
    %597 = vmatprep.subr.mxu0 0.0
    %598 = vmatpush1.msra.mxu0 0.0
    %599 = vmatprep.subr.mxu0 0.0
    %600 = vmatpush1.msra.mxu0 0.0
    %601 = vmatprep.subr.mxu0 0.0
    %602 = vmatpush1.msra.mxu0 0.0
    %603 = vmatprep.subr.mxu0 0.0
    %604 = vmatpush1.msra.mxu0 0.0
    %605 = vmatprep.subr.mxu0 0.0
    %606 = vmatpush1.msra.mxu0 0.0
    %607 = vmatprep.subr.mxu0 0.0
    %608 = vmatpush1.msra.mxu0 0.0
    %609 = vmatprep.mubr.f32.mxu0 %v259
    %610 = vmatmul.mubr.f32.gmra.mrb[0].mxu0 %v15
    %v611 = vpop.f32.mrb[0].mxu0
    %v612 = vadd.f32 0.0, %v611
    %v613 = vpop.f32.mrb[0].mxu0
    %v614 = vadd.f32 0.0, %v613
    %615 = vdwg.mxu0
    %v616 = vmax.f32 %v328, %v330
    %v617 = vmax.f32 %v616, %v399
    %v618 = vmax.f32 %v617, %v401
    %v619 = vmax.f32 %v618, %v470
    %v620 = vmax.f32 %v619, %v472
    %v621 = vmax.f32 %v620, %v541
    %v622 = vmax.f32 %v621, %v543
    %v623 = vmax.f32 %v622, %v612
    %v624 = vmax.f32 %v623, %v614
    %v625 = vld [vmem:[%s2] sm:$0x1]
    %v627 = vlaneseq
    %v628 = vshrl.u32 %v627, 7
    %v629 = vsub.s32 0, %v628
    %v630 = vrot.slane %v625, %v629
    %v632 = vadd.f32 %v624, %v630
    %v633 = vmax.f32 %v632, 0.0
    %634 = vst [vmem:[#allocation2] sm:$0xff] %v633
    // Predicated region
    $region14: #{cnn_forward.1} parent=1 // pred_check
      _
    $region15: #{cnn_forward.1} parent=1 // pred_check_branch
      %636 = sbr.rel (0) target = $region17
    $region16: #{cnn_forward.1} parent=1 // pred_region
      %s638 = ssub.s32 128, 128
      %639 = vsyncadd [#allocation3], %s638
      %s641 = sshll.u32 [#allocation2], 4
      %s642 = int_to_ptr.vmem [resolvable:$true] %s641
      %644 = dma.vmem_to_hbm [thread:$0]  %s642, 128, %s3, [#allocation3]
    $region17: #{cnn_forward.1} parent=1 // pred_fallthru
      _
    // Predicated region
    $region18: #{cnn_forward.1} parent=1 // pred_check
      _
    $region19: #{cnn_forward.1} parent=1 // pred_check_branch
      %646 = sbr.rel (0) target = $region21
    $region20: #{cnn_forward.1} parent=1 // pred_region
      %647 = dma.done [#allocation3], 128
    $region21: #{cnn_forward.1} parent=1 // pred_fallthru
      _
    %648 = vsyncpa [#allocation3], 1

</llo_original>
